<compile_context>
chip_gen: v7x
topology: tpu7x:2x2x1
jax: 0.10.0
libtpu: 0.0.40
codegen_flags: <defaults>
</compile_context>

<pallas_src>
import functools

import jax
import jax.numpy as jnp
from jax.experimental import pallas as pl
from jax.experimental.pallas import tpu as pltpu


def _layernorm(u, gamma, beta, eps=1e-5):
    mu = jnp.mean(u, axis=-1, keepdims=True)
    var = jnp.mean((u - mu) ** 2, axis=-1, keepdims=True)
    return (u - mu) * jax.lax.rsqrt(var + eps) * gamma + beta


# --------------------------------------------------------------------------
# K/V projection kernel: runs once per batch element, outputs bf16 k, v.
# --------------------------------------------------------------------------
def kv_proj_kernel(y_ref, z_ref, wk_ref, wv_ref, bk_ref, bv_ref, k_ref, v_ref):
    _, Sk, E = y_ref.shape
    yf = y_ref[...].reshape(Sk, E)          # bf16
    zf = z_ref[...].reshape(Sk, E)          # bf16
    k = jnp.dot(yf, wk_ref[...], preferred_element_type=jnp.float32) + bk_ref[0]
    v = jnp.dot(zf, wv_ref[...], preferred_element_type=jnp.float32) + bv_ref[0]
    k_ref[...] = k.astype(k_ref.dtype).reshape(1, Sk, E)
    v_ref[...] = v.astype(v_ref.dtype).reshape(1, Sk, E)


def _kv_projection(y, z, wk, wv, bk, bv, vmem_limit_bytes):
    B, Sk, E = y.shape
    const = lambda a: pl.BlockSpec(a.shape, lambda b: (0, 0))
    return pl.pallas_call(
        kv_proj_kernel,
        out_shape=[jax.ShapeDtypeStruct((B, Sk, E), jnp.bfloat16),
                   jax.ShapeDtypeStruct((B, Sk, E), jnp.bfloat16)],
        grid_spec=pltpu.PrefetchScalarGridSpec(
            num_scalar_prefetch=0,
            grid=(B,),
            in_specs=[
                pl.BlockSpec((1, Sk, E), lambda b: (b, 0, 0)),   # y (bf16)
                pl.BlockSpec((1, Sk, E), lambda b: (b, 0, 0)),   # z (bf16)
                const(wk), const(wv), const(bk), const(bv),
            ],
            out_specs=[
                pl.BlockSpec((1, Sk, E), lambda b: (b, 0, 0)),
                pl.BlockSpec((1, Sk, E), lambda b: (b, 0, 0)),
            ]),
        compiler_params=pltpu.CompilerParams(
            dimension_semantics=("parallel",),
            vmem_limit_bytes=vmem_limit_bytes),
    )(y.astype(jnp.bfloat16), z.astype(jnp.bfloat16), wk, wv, bk, bv)


# --------------------------------------------------------------------------
# Main transformer-block kernel (attention over precomputed bf16 K/V + FFN).
# --------------------------------------------------------------------------
def transformer_block_kernel(
    x_ref, k_ref, v_ref,
    wq_ref, bq_ref, wo_ref, bo_ref,
    w1_ref, b1_ref, w2_ref, b2_ref,
    g1_ref, be1_ref, g2_ref, be2_ref,
    out_ref, attnw_ref,
    *, num_heads,
):
    Bt, Tq, E = x_ref.shape
    Sk = k_ref.shape[1]
    H = num_heads
    Dh = E // H
    bf16 = jnp.bfloat16

    x = x_ref[...]                                       # (Bt, Tq, E) f32
    xf = x.reshape(Bt * Tq, E)

    # Q projection (scale & bq already folded into wq/bq on the host).
    q = jnp.dot(xf.astype(bf16), wq_ref[...],
                preferred_element_type=jnp.float32) + bq_ref[0]

    # Head-major relayout once per tile (no per-head lane slicing).
    qh = (q.astype(bf16).reshape(Bt, Tq, H, Dh)
          .transpose(0, 2, 1, 3).reshape(Bt * H, Tq, Dh))
    kh = (k_ref[...].reshape(Bt, Sk, H, Dh)
          .transpose(0, 2, 1, 3).reshape(Bt * H, Sk, Dh))
    vh = (v_ref[...].reshape(Bt, Sk, H, Dh)
          .transpose(0, 2, 1, 3).reshape(Bt * H, Sk, Dh))

    # Head-batched attention: one contraction stream for all heads.
    s = jnp.einsum("bqd,bkd->bqk", qh, kh,
                   preferred_element_type=jnp.float32)   # (Bt*H, Tq, Sk) f32
    m = jnp.max(s, axis=-1, keepdims=True)
    e = jnp.exp(s - m)
    p = e * pl.reciprocal(jnp.sum(e, axis=-1, keepdims=True), approx=True)

    o = jnp.einsum("bqk,bkd->bqd", p.astype(bf16), vh,
                   preferred_element_type=jnp.float32)   # (Bt*H, Tq, Dh)
    attn = (o.astype(bf16).reshape(Bt, H, Tq, Dh)
            .transpose(0, 2, 1, 3).reshape(Bt * Tq, E))
    attn_out = jnp.dot(attn, wo_ref[...],
                       preferred_element_type=jnp.float32) + bo_ref[0]

    # residual + LN1 (f32)
    out1 = _layernorm(xf + attn_out, g1_ref[0], be1_ref[0])

    # FFN: Linear -> ReLU -> Linear (bf16 MXU, f32 accumulation/elementwise)
    h1 = jnp.maximum(
        jnp.dot(out1.astype(bf16), w1_ref[...],
                preferred_element_type=jnp.float32) + b1_ref[0], 0.0)
    ffn = jnp.dot(h1.astype(bf16), w2_ref[...],
                  preferred_element_type=jnp.float32) + b2_ref[0]

    # residual + LN2 (f32)
    out2 = _layernorm(out1 + ffn, g2_ref[0], be2_ref[0])

    out_ref[...] = out2.reshape(Bt, Tq, E).astype(out_ref.dtype)
    # attention weights averaged over heads (bf16 writeback).
    attnw_ref[...] = jnp.mean(p.reshape(Bt, H, Tq, Sk), axis=1).astype(attnw_ref.dtype)


def transformer_block(x, y, z, params, num_heads, *, bt=1, tq=None,
                      vmem_limit_bytes=48 * 1024 * 1024):
    B, Sq, E = x.shape
    _, Sk, _ = y.shape
    if tq is None:
        tq = Sq
    assert E % num_heads == 0, "embed_dim must be divisible by num_heads"
    assert B % bt == 0 and Sq % tq == 0
    assert tq % 8 == 0 and E % 128 == 0 and Sk % 128 == 0, \
        "lane/sublane alignment: tq%8, E%128, Sk%128 required"

    Dh = E // num_heads
    scale = 1.0 / (Dh ** 0.5)

    # Weight matrices feed the MXU in bf16; biases / LN params stay f32.
    # 1/sqrt(Dh) is folded into the Q projection here (free on host).
    wq = (params["wqt"] * scale).astype(jnp.bfloat16)
    bq = params["bq"] * scale
    wk = params["wkt"].astype(jnp.bfloat16)
    wv = params["wvt"].astype(jnp.bfloat16)
    wo = params["wot"].astype(jnp.bfloat16)
    w1 = params["w1t"].astype(jnp.bfloat16)
    w2 = params["w2t"].astype(jnp.bfloat16)

    # K/V projections computed once per (batch, key position) — never
    # recomputed across query tiles.
    k, v = _kv_projection(y, z, wk, wv, params["bk"], params["bv"],
                          vmem_limit_bytes)

    def const_spec(a):
        r, c = a.shape
        return pl.BlockSpec((r, c), lambda b, q: (0, 0))

    in_specs = [
        pl.BlockSpec((bt, tq, E), lambda b, q: (b, q, 0)),   # x (query tile) f32
        pl.BlockSpec((bt, Sk, E), lambda b, q: (b, 0, 0)),   # k (bf16, full keys)
        pl.BlockSpec((bt, Sk, E), lambda b, q: (b, 0, 0)),   # v (bf16, full values)
        const_spec(wq), const_spec(bq),
        const_spec(wo), const_spec(params["bo"]),
        const_spec(w1), const_spec(params["b1"]),
        const_spec(w2), const_spec(params["b2"]),
        const_spec(params["g1"]), const_spec(params["be1"]),
        const_spec(params["g2"]), const_spec(params["be2"]),
    ]
    out_specs = [
        pl.BlockSpec((bt, tq, E), lambda b, q: (b, q, 0)),
        pl.BlockSpec((bt, tq, Sk), lambda b, q: (b, q, 0)),
    ]
    out_shape = [
        jax.ShapeDtypeStruct((B, Sq, E), jnp.float32),
        jax.ShapeDtypeStruct((B, Sq, Sk), jnp.bfloat16),     # half-width writeback
    ]

    kernel = functools.partial(transformer_block_kernel, num_heads=num_heads)
    return pl.pallas_call(
        kernel,
        out_shape=out_shape,
        grid_spec=pltpu.PrefetchScalarGridSpec(
            num_scalar_prefetch=0,
            grid=(B // bt, Sq // tq),
            in_specs=in_specs,
            out_specs=out_specs,
        ),
        compiler_params=pltpu.CompilerParams(
            dimension_semantics=("parallel", "parallel"),
            vmem_limit_bytes=vmem_limit_bytes,
        ),
    )(
        x, k, v,
        wq, bq, wo, params["bo"],
        w1, params["b1"], w2, params["b2"],
        params["g1"], params["be1"], params["g2"], params["be2"],
    )


def reference_transformer_block(x, y, z, p, num_heads):
    """Pure-JAX (f32) mirror of the PyTorch TransformerBlock forward (eval mode)."""
    B, Sq, E = x.shape
    Sk = y.shape[1]
    Dh = E // num_heads
    scale = 1.0 / (Dh ** 0.5)

    q = x @ p["wqt"] + p["bq"]
    k = y @ p["wkt"] + p["bk"]
    v = z @ p["wvt"] + p["bv"]

    qh = q.reshape(B, Sq, num_heads, Dh).transpose(0, 2, 1, 3) * scale
    kh = k.reshape(B, Sk, num_heads, Dh).transpose(0, 2, 1, 3)
    vh = v.reshape(B, Sk, num_heads, Dh).transpose(0, 2, 1, 3)

    s = jnp.einsum("bhqd,bhkd->bhqk", qh, kh)
    pw = jax.nn.softmax(s, axis=-1)
    attn = jnp.einsum("bhqk,bhkd->bhqd", pw, vh)
    attn = attn.transpose(0, 2, 1, 3).reshape(B, Sq, E)
    attn_out = attn @ p["wot"] + p["bo"]
    attn_w = jnp.mean(pw, axis=1)                       # averaged over heads

    out1 = _layernorm(x + attn_out, p["g1"][0], p["be1"][0])
    ffn = jnp.maximum(out1 @ p["w1t"] + p["b1"], 0.0) @ p["w2t"] + p["b2"]
    out2 = _layernorm(out1 + ffn, p["g2"][0], p["be2"][0])
    return out2, attn_w


def init_params(key, embed_dim, num_heads, ff_dim):
    ks = jax.random.split(key, 8)
    sc = 0.05
    # nn.MultiheadAttention: in_proj_weight (3E, E) split into q/k/v;
    # stored here pre-transposed as (E, E) "x @ W^T" matrices.
    wqt = sc * jax.random.normal(ks[0], (embed_dim, embed_dim), jnp.float32)
    wkt = sc * jax.random.normal(ks[1], (embed_dim, embed_dim), jnp.float32)
    wvt = sc * jax.random.normal(ks[2], (embed_dim, embed_dim), jnp.float32)
    wot = sc * jax.random.normal(ks[3], (embed_dim, embed_dim), jnp.float32)
    w1t = sc * jax.random.normal(ks[4], (embed_dim, ff_dim), jnp.float32)
    w2t = sc * jax.random.normal(ks[5], (ff_dim, embed_dim), jnp.float32)
    bq = 0.01 * jax.random.normal(ks[6], (1, embed_dim), jnp.float32)
    bk = jnp.zeros((1, embed_dim), jnp.float32)
    bv = 0.01 * jax.random.normal(ks[7], (1, embed_dim), jnp.float32)
    bo = jnp.zeros((1, embed_dim), jnp.float32)
    b1 = jnp.zeros((1, ff_dim), jnp.float32)
    b2 = jnp.zeros((1, embed_dim), jnp.float32)
    g1 = jnp.ones((1, embed_dim), jnp.float32)
    be1 = jnp.zeros((1, embed_dim), jnp.float32)
    g2 = jnp.ones((1, embed_dim), jnp.float32)
    be2 = jnp.zeros((1, embed_dim), jnp.float32)
    return dict(wqt=wqt, wkt=wkt, wvt=wvt, wot=wot, w1t=w1t, w2t=w2t,
                bq=bq, bk=bk, bv=bv, bo=bo, b1=b1, b2=b2,
                g1=g1, be1=be1, g2=g2, be2=be2)


if __name__ == "__main__":
    # Small but lane-aligned shapes: E and S are multiples of 128 so blocks and
    # output stores are unmasked; Dh = 128/4 = 32.
    B, S, E, H, FF = 2, 128, 128, 4, 256

    key = jax.random.PRNGKey(0)
    kx, ky, kz, kp = jax.random.split(key, 4)
    x = jax.random.normal(kx, (B, S, E), jnp.float32)
    y = jax.random.normal(ky, (B, S, E), jnp.float32)
    z = jax.random.normal(kz, (B, S, E), jnp.float32)
    params = init_params(kp, E, H, FF)

    # Main grid = (B/bt, S/tq) = (2, 1): batch axis parallel (one tile per TC
    # on 2-core chips); K/V projection runs in its own batch-parallel call.
    out, attn_w = transformer_block(x, y, z, params, num_heads=H, bt=1, tq=128)
    out = jax.block_until_ready(out)
    attn_w = jax.block_until_ready(attn_w)

    ref_out, ref_w = reference_transformer_block(x, y, z, params, num_heads=H)

    assert out.shape == (B, S, E) and attn_w.shape == (B, S, S)
    # bf16 MXU inputs (f32 accumulation) + approx reciprocal -> looser
    # tolerances vs. the f32 reference; attn_w is additionally bf16-stored.
    assert jnp.allclose(out, ref_out, atol=5e-2, rtol=5e-2), \
        float(jnp.max(jnp.abs(out - ref_out)))
    assert jnp.allclose(attn_w.astype(jnp.float32), ref_w, atol=1e-2, rtol=5e-2), \
        float(jnp.max(jnp.abs(attn_w.astype(jnp.float32) - ref_w)))

    print("KERNEL_OK")
</pallas_src>

<mosaic_0001>
module attributes {stable_mosaic.version = 11 : i64} {
  func.func @kv_proj_kernel(%arg0: i32, %arg1: memref<1x128x128xbf16, #tpu.memory_space<vmem>>, %arg2: memref<1x128x128xbf16, #tpu.memory_space<vmem>>, %arg3: memref<128x128xbf16, #tpu.memory_space<vmem>>, %arg4: memref<128x128xbf16, #tpu.memory_space<vmem>>, %arg5: memref<1x128xf32, #tpu.memory_space<vmem>>, %arg6: memref<1x128xf32, #tpu.memory_space<vmem>>, %arg7: memref<1x128x128xbf16, #tpu.memory_space<vmem>>, %arg8: memref<1x128x128xbf16, #tpu.memory_space<vmem>>) attributes {dimension_semantics = [#tpu.dimension_semantics<parallel>], iteration_bounds = array<i64: 2>, scalar_prefetch = 0 : i64, scratch_operands = 0 : i64, tpu.core_type = #tpu.core_type<tc>, window_params = [{transform_indices = @transform_0, window_bounds = array<i64: 1, 128, 128>}, {transform_indices = @transform_1, window_bounds = array<i64: 1, 128, 128>}, {pipeline_mode = #tpu.pipeline_mode<synchronous>, transform_indices = @transform_2, window_bounds = array<i64: 128, 128>}, {pipeline_mode = #tpu.pipeline_mode<synchronous>, transform_indices = @transform_3, window_bounds = array<i64: 128, 128>}, {pipeline_mode = #tpu.pipeline_mode<synchronous>, transform_indices = @transform_4, window_bounds = array<i64: 1, 128>}, {pipeline_mode = #tpu.pipeline_mode<synchronous>, transform_indices = @transform_5, window_bounds = array<i64: 1, 128>}, {transform_indices = @transform_6, window_bounds = array<i64: 1, 128, 128>}, {transform_indices = @transform_7, window_bounds = array<i64: 1, 128, 128>}]} {
    %c0 = arith.constant 0 : index
    %c0_0 = arith.constant 0 : index
    %c0_1 = arith.constant 0 : index
    %0 = vector.load %arg1[%c0, %c0_0, %c0_1] : memref<1x128x128xbf16, #tpu.memory_space<vmem>>, vector<1x128x128xbf16>
    %1 = vector.shape_cast %0 : vector<1x128x128xbf16> to vector<128x128xbf16>
    %c0_2 = arith.constant 0 : index
    %c0_3 = arith.constant 0 : index
    %c0_4 = arith.constant 0 : index
    %2 = vector.load %arg2[%c0_2, %c0_3, %c0_4] : memref<1x128x128xbf16, #tpu.memory_space<vmem>>, vector<1x128x128xbf16>
    %3 = vector.shape_cast %2 : vector<1x128x128xbf16> to vector<128x128xbf16>
    %c0_5 = arith.constant 0 : index
    %c0_6 = arith.constant 0 : index
    %4 = vector.load %arg3[%c0_5, %c0_6] : memref<128x128xbf16, #tpu.memory_space<vmem>>, vector<128x128xbf16>
    %cst = arith.constant dense<0.000000e+00> : vector<128x128xf32>
    %5 = tpu.matmul %1, %4, %cst {dimension_numbers = #tpu.dot_dimension_numbers<[1], [0], [0], [1], [0, 0, 1, 1], [], []>} : vector<128x128xbf16>, vector<128x128xbf16>, vector<128x128xf32> -> vector<128x128xf32>
    %c0_7 = arith.constant 0 : index
    %c0_8 = arith.constant 0 : index
    %6 = vector.load %arg5[%c0_7, %c0_8] : memref<1x128xf32, #tpu.memory_space<vmem>>, vector<1x128xf32>
    %7 = vector.shape_cast %6 : vector<1x128xf32> to vector<128xf32>
    %8 = vector.shape_cast %7 : vector<128xf32> to vector<1x128xf32>
    %9 = vector.broadcast %8 : vector<1x128xf32> to vector<128x128xf32>
    %10 = arith.addf %5, %9 : vector<128x128xf32>
    %c0_9 = arith.constant 0 : index
    %c0_10 = arith.constant 0 : index
    %11 = vector.load %arg4[%c0_9, %c0_10] : memref<128x128xbf16, #tpu.memory_space<vmem>>, vector<128x128xbf16>
    %cst_11 = arith.constant dense<0.000000e+00> : vector<128x128xf32>
    %12 = tpu.matmul %3, %11, %cst_11 {dimension_numbers = #tpu.dot_dimension_numbers<[1], [0], [0], [1], [0, 0, 1, 1], [], []>} : vector<128x128xbf16>, vector<128x128xbf16>, vector<128x128xf32> -> vector<128x128xf32>
    %c0_12 = arith.constant 0 : index
    %c0_13 = arith.constant 0 : index
    %13 = vector.load %arg6[%c0_12, %c0_13] : memref<1x128xf32, #tpu.memory_space<vmem>>, vector<1x128xf32>
    %14 = vector.shape_cast %13 : vector<1x128xf32> to vector<128xf32>
    %15 = vector.shape_cast %14 : vector<128xf32> to vector<1x128xf32>
    %16 = vector.broadcast %15 : vector<1x128xf32> to vector<128x128xf32>
    %17 = arith.addf %12, %16 : vector<128x128xf32>
    %18 = arith.truncf %10 : vector<128x128xf32> to vector<128x128xbf16>
    %19 = vector.shape_cast %18 : vector<128x128xbf16> to vector<1x128x128xbf16>
    %c0_14 = arith.constant 0 : index
    %c0_15 = arith.constant 0 : index
    %c0_16 = arith.constant 0 : index
    %20 = vector.load %arg7[%c0_14, %c0_15, %c0_16] : memref<1x128x128xbf16, #tpu.memory_space<vmem>>, vector<1x128x128xbf16>
    tpu.vector_store %arg7[%c0_14, %c0_15, %c0_16], %19 {strides = array<i32>} : memref<1x128x128xbf16, #tpu.memory_space<vmem>>, vector<1x128x128xbf16>,
    %21 = arith.truncf %17 : vector<128x128xf32> to vector<128x128xbf16>
    %22 = vector.shape_cast %21 : vector<128x128xbf16> to vector<1x128x128xbf16>
    %c0_17 = arith.constant 0 : index
    %c0_18 = arith.constant 0 : index
    %c0_19 = arith.constant 0 : index
    %23 = vector.load %arg8[%c0_17, %c0_18, %c0_19] : memref<1x128x128xbf16, #tpu.memory_space<vmem>>, vector<1x128x128xbf16>
    tpu.vector_store %arg8[%c0_17, %c0_18, %c0_19], %22 {strides = array<i32>} : memref<1x128x128xbf16, #tpu.memory_space<vmem>>, vector<1x128x128xbf16>,
    return
  }
  func.func @transform_0(%arg0: i32) -> (i32, i32, i32) {
    %c0_i32 = arith.constant 0 : i32
    %c0_i32_0 = arith.constant 0 : i32
    %c0_i32_1 = arith.constant 0 : i32
    return %arg0, %c0_i32, %c0_i32_0 : i32, i32, i32
  }
  func.func @transform_1(%arg0: i32) -> (i32, i32, i32) {
    %c0_i32 = arith.constant 0 : i32
    %c0_i32_0 = arith.constant 0 : i32
    %c0_i32_1 = arith.constant 0 : i32
    return %arg0, %c0_i32, %c0_i32_0 : i32, i32, i32
  }
  func.func @transform_2(%arg0: i32) -> (i32, i32) {
    %c0_i32 = arith.constant 0 : i32
    %c0_i32_0 = arith.constant 0 : i32
    %c0_i32_1 = arith.constant 0 : i32
    return %c0_i32, %c0_i32_0 : i32, i32
  }
  func.func @transform_3(%arg0: i32) -> (i32, i32) {
    %c0_i32 = arith.constant 0 : i32
    %c0_i32_0 = arith.constant 0 : i32
    %c0_i32_1 = arith.constant 0 : i32
    return %c0_i32, %c0_i32_0 : i32, i32
  }
  func.func @transform_4(%arg0: i32) -> (i32, i32) {
    %c0_i32 = arith.constant 0 : i32
    %c0_i32_0 = arith.constant 0 : i32
    %c0_i32_1 = arith.constant 0 : i32
    return %c0_i32, %c0_i32_0 : i32, i32
  }
  func.func @transform_5(%arg0: i32) -> (i32, i32) {
    %c0_i32 = arith.constant 0 : i32
    %c0_i32_0 = arith.constant 0 : i32
    %c0_i32_1 = arith.constant 0 : i32
    return %c0_i32, %c0_i32_0 : i32, i32
  }
  func.func @transform_6(%arg0: i32) -> (i32, i32, i32) {
    %c0_i32 = arith.constant 0 : i32
    %c0_i32_0 = arith.constant 0 : i32
    %c0_i32_1 = arith.constant 0 : i32
    return %arg0, %c0_i32, %c0_i32_0 : i32, i32, i32
  }
  func.func @transform_7(%arg0: i32) -> (i32, i32, i32) {
    %c0_i32 = arith.constant 0 : i32
    %c0_i32_0 = arith.constant 0 : i32
    %c0_i32_1 = arith.constant 0 : i32
    return %arg0, %c0_i32, %c0_i32_0 : i32, i32, i32
  }
}

</mosaic_0001>

<llo_original>
// kernel: tpu_custom_call.1
$region0: #{tpu_custom_call.1}
  #allocation0 [shape = 'u32[]', space=smem, size = 0x4, offset = 0x4, fixed_abs, tag = 'smem constant byte address 0x4 - core index']
  #allocation1 [shape = 'u32[144,128]{1,0:T(1,128)}', space=vmem, size = 0x12000, scoped, tag = 'internal scratch']
  %s0 = inlined_call_operand.hbm [shape: bf16[2,128,128], index: 0, kind: input, shape index: {}]
  %s1 = inlined_call_operand.hbm [shape: bf16[2,128,128], index: 1, kind: input, shape index: {}]
  %s2 = inlined_call_operand.hbm [shape: bf16[128,128], index: 2, kind: input, shape index: {}]
  %s3 = inlined_call_operand.hbm [shape: bf16[128,128], index: 3, kind: input, shape index: {}]
  %s4 = inlined_call_operand.vmem [shape: f32[1,128], index: 4, kind: input, shape index: {}]
  %s5 = inlined_call_operand.vmem [shape: f32[1,128], index: 5, kind: input, shape index: {}]
  %s6 = inlined_call_operand.hbm [shape: bf16[2,128,128], index: 6, kind: output, shape index: {0}]
  %s7 = inlined_call_operand.hbm [shape: bf16[2,128,128], index: 7, kind: output, shape index: {1}]
  %8 = xla_tuple %s6, %s7
  %s9 = sld [smem:[#allocation0]]
  $region81: #{tpu_custom_call.1} parent=0
    _
  %s11 = ssub.s32 1, %s9
  %s12 = scalar_select 0, %s11, %s9
  $region1: #{tpu_custom_call.1} parent=0
    #allocation2 [shape = 'u8[65536]{0}', space=vmem, size = 0x10000, scoped, tag = 'input window, operand 0']
    #allocation3 [shape = 's32[2]{0}', space=sflag, size = 0x8, scoped, tag = 'scoped memory for tpu_custom_call.1']
    #allocation4 [shape = 's32[2]{0}', space=sflag, size = 0x8, scoped, tag = 'scoped memory for tpu_custom_call.1']
    #allocation5 [shape = 'u8[65536]{0}', space=vmem, size = 0x10000, scoped, tag = 'input window, operand 1']
    #allocation6 [shape = 's32[2]{0}', space=sflag, size = 0x8, scoped, tag = 'scoped memory for tpu_custom_call.1']
    #allocation7 [shape = 'u8[32768]{0}', space=vmem, size = 0x8000, scoped, tag = 'input window, operand 2, single buffered']
    #allocation8 [shape = 'u8[32768]{0}', space=vmem, size = 0x8000, scoped, tag = 'input window, operand 3, single buffered']
    #allocation9 [shape = 's32[1]{0}', space=sflag, size = 0x4, scoped, tag = 'scoped memory for tpu_custom_call.1']
    #allocation10 [shape = 'u8[65536]{0}', space=vmem, size = 0x10000, scoped, tag = 'output window, operand 0']
    #allocation11 [shape = 'u8[65536]{0}', space=vmem, size = 0x10000, scoped, tag = 'output window, operand 1']
    #allocation12 [shape = 's32[2]{0}', space=sflag, size = 0x8, scoped, tag = 'scoped memory for tpu_custom_call.1']
    %13 = vsyncpa [#allocation3], 0
    %s14 = scalar_lea.sflag [#allocation3], 1
    %15 = vsyncpa %s14, 0
    %16 = vsyncpa [#allocation6], 0
    %s17 = scalar_lea.sflag [#allocation6], 1
    %18 = vsyncpa %s17, 0
    %19 = vsyncpa [#allocation9], 0
    %20 = vsyncpa [#allocation4], 0
    %s21 = scalar_lea.sflag [#allocation4], 1
    %22 = vsyncpa %s21, 0
    %23 = vsyncpa [#allocation12], 0
    %s24 = scalar_lea.sflag [#allocation12], 1
    %25 = vsyncpa %s24, 0
    loop: start=0, step=1, limit=4
    $region2: #{tpu_custom_call.1} parent=1 // loop_pre_header
      _
    $region3: #{tpu_custom_call.1} parent=1 // loop_header
      %s27 = sphi 0, %s31
      %p28 = scmp.ge.s32.totalorder %s27, 4
      %s37 = sphi 0, %s39
      %s40 = sphi 0, %s37
      %s41 = sphi 0, %s40
      %s57 = sphi 0, %s41
      %s63 = sphi 0, %s65
      %s66 = sphi 0, %s63
      %s67 = sphi 0, %s66
      %s83 = sphi 0, %s67
      %s87 = sphi 0, %s87
      %s89 = sphi 0, %s87
      %s90 = sphi 0, %s89
      %s104 = sphi 0, %s90
      %s108 = sphi 0, %s108
      %s110 = sphi 0, %s108
      %s111 = sphi 0, %s110
      %s125 = sphi 0, %s111
      %s129 = sphi 0, %s129
      %s131 = sphi 0, %s129
      %s132 = sphi 0, %s131
      %s146 = sphi 0, %s132
      %s150 = sphi 0, %s150
      %s152 = sphi 0, %s150
      %s153 = sphi 0, %s152
      %s167 = sphi 0, %s153
      %s173 = sphi 0, %s175
      %s176 = sphi 0, %s173
      %s177 = sphi 0, %s176
      %s193 = sphi 0, %s177
      %s199 = sphi 0, %s201
      %s202 = sphi 0, %s199
      %s203 = sphi 0, %s202
      %s219 = sphi 0, %s203
    $region4: #{tpu_custom_call.1} parent=1 // loop_header_branch
      %30 = sbr.rel (%p28) target = $region8
    $region5: #{tpu_custom_call.1} parent=1 // loop_body
      %s32 = ssub.s32 %s27, 1
      %s33 = ssub.s32 %s27, 2
      %s34 = sadd.s32 %s27, 1
      %s35 = ssub.s32 %s27, %s34
      %p36 = scmp.eq.s32.totalorder %s35, 0
      %s38 = sadd.s32 %s37, 1
      %s39 = scalar_select %p36, %s37, %s38
      %p42 = pneg %p36
      %p43 = scmp.eq.s32.totalorder %s27, 1
      %p44 = por %p42, %p43
      %p45 = scmp.ne.s32.totalorder %s37, %s40
      %p46 = scmp.eq.s32.totalorder %s27, 0
      %p47 = por %p45, %p46
      %p48 = scmp.ne.s32.totalorder %s37, %s40
      %p49 = scmp.eq.s32.totalorder %s32, 1
      %p50 = por %p48, %p49
      %p51 = scmp.ne.s32.totalorder %s40, %s41
      %p52 = scmp.eq.s32.totalorder %s32, 0
      %p53 = por %p51, %p52
      %p54 = scmp.ne.s32.totalorder %s40, %s41
      %p55 = scmp.eq.s32.totalorder %s33, 1
      %p56 = por %p54, %p55
      %p58 = scmp.ne.s32.totalorder %s41, %s57
      %p59 = scmp.eq.s32.totalorder %s33, 0
      %p60 = por %p58, %p59
      %s61 = ssub.s32 %s27, %s34
      %p62 = scmp.eq.s32.totalorder %s61, 0
      %s64 = sadd.s32 %s63, 1
      %s65 = scalar_select %p62, %s63, %s64
      %p68 = pneg %p62
      %p69 = scmp.eq.s32.totalorder %s27, 1
      %p70 = por %p68, %p69
      %p71 = scmp.ne.s32.totalorder %s63, %s66
      %p72 = scmp.eq.s32.totalorder %s27, 0
      %p73 = por %p71, %p72
      %p74 = scmp.ne.s32.totalorder %s63, %s66
      %p75 = scmp.eq.s32.totalorder %s32, 1
      %p76 = por %p74, %p75
      %p77 = scmp.ne.s32.totalorder %s66, %s67
      %p78 = scmp.eq.s32.totalorder %s32, 0
      %p79 = por %p77, %p78
      %p80 = scmp.ne.s32.totalorder %s66, %s67
      %p81 = scmp.eq.s32.totalorder %s33, 1
      %p82 = por %p80, %p81
      %p84 = scmp.ne.s32.totalorder %s67, %s83
      %p85 = scmp.eq.s32.totalorder %s33, 0
      %p86 = por %p84, %p85
      %s88 = sadd.s32 %s87, 1
      %p91 = scmp.eq.s32.totalorder %s27, 1
      %p92 = scmp.ne.s32.totalorder %s87, %s89
      %p93 = scmp.eq.s32.totalorder %s27, 0
      %p94 = por %p92, %p93
      %p95 = scmp.ne.s32.totalorder %s87, %s89
      %p96 = scmp.eq.s32.totalorder %s32, 1
      %p97 = por %p95, %p96
      %p98 = scmp.ne.s32.totalorder %s89, %s90
      %p99 = scmp.eq.s32.totalorder %s32, 0
      %p100 = por %p98, %p99
      %p101 = scmp.ne.s32.totalorder %s89, %s90
      %p102 = scmp.eq.s32.totalorder %s33, 1
      %p103 = por %p101, %p102
      %p105 = scmp.ne.s32.totalorder %s90, %s104
      %p106 = scmp.eq.s32.totalorder %s33, 0
      %p107 = por %p105, %p106
      %s109 = sadd.s32 %s108, 1
      %p112 = scmp.eq.s32.totalorder %s27, 1
      %p113 = scmp.ne.s32.totalorder %s108, %s110
      %p114 = scmp.eq.s32.totalorder %s27, 0
      %p115 = por %p113, %p114
      %p116 = scmp.ne.s32.totalorder %s108, %s110
      %p117 = scmp.eq.s32.totalorder %s32, 1
      %p118 = por %p116, %p117
      %p119 = scmp.ne.s32.totalorder %s110, %s111
      %p120 = scmp.eq.s32.totalorder %s32, 0
      %p121 = por %p119, %p120
      %p122 = scmp.ne.s32.totalorder %s110, %s111
      %p123 = scmp.eq.s32.totalorder %s33, 1
      %p124 = por %p122, %p123
      %p126 = scmp.ne.s32.totalorder %s111, %s125
      %p127 = scmp.eq.s32.totalorder %s33, 0
      %p128 = por %p126, %p127
      %s130 = sadd.s32 %s129, 1
      %p133 = scmp.eq.s32.totalorder %s27, 1
      %p134 = scmp.ne.s32.totalorder %s129, %s131
      %p135 = scmp.eq.s32.totalorder %s27, 0
      %p136 = por %p134, %p135
      %p137 = scmp.ne.s32.totalorder %s129, %s131
      %p138 = scmp.eq.s32.totalorder %s32, 1
      %p139 = por %p137, %p138
      %p140 = scmp.ne.s32.totalorder %s131, %s132
      %p141 = scmp.eq.s32.totalorder %s32, 0
      %p142 = por %p140, %p141
      %p143 = scmp.ne.s32.totalorder %s131, %s132
      %p144 = scmp.eq.s32.totalorder %s33, 1
      %p145 = por %p143, %p144
      %p147 = scmp.ne.s32.totalorder %s132, %s146
      %p148 = scmp.eq.s32.totalorder %s33, 0
      %p149 = por %p147, %p148
      %s151 = sadd.s32 %s150, 1
      %p154 = scmp.eq.s32.totalorder %s27, 1
      %p155 = scmp.ne.s32.totalorder %s150, %s152
      %p156 = scmp.eq.s32.totalorder %s27, 0
      %p157 = por %p155, %p156
      %p158 = scmp.ne.s32.totalorder %s150, %s152
      %p159 = scmp.eq.s32.totalorder %s32, 1
      %p160 = por %p158, %p159
      %p161 = scmp.ne.s32.totalorder %s152, %s153
      %p162 = scmp.eq.s32.totalorder %s32, 0
      %p163 = por %p161, %p162
      %p164 = scmp.ne.s32.totalorder %s152, %s153
      %p165 = scmp.eq.s32.totalorder %s33, 1
      %p166 = por %p164, %p165
      %p168 = scmp.ne.s32.totalorder %s153, %s167
      %p169 = scmp.eq.s32.totalorder %s33, 0
      %p170 = por %p168, %p169
      %s171 = ssub.s32 %s27, %s34
      %p172 = scmp.eq.s32.totalorder %s171, 0
      %s174 = sadd.s32 %s173, 1
      %s175 = scalar_select %p172, %s173, %s174
      %p178 = pneg %p172
      %p179 = scmp.eq.s32.totalorder %s27, 1
      %p180 = por %p178, %p179
      %p181 = scmp.ne.s32.totalorder %s173, %s176
      %p182 = scmp.eq.s32.totalorder %s27, 0
      %p183 = por %p181, %p182
      %p184 = scmp.ne.s32.totalorder %s173, %s176
      %p185 = scmp.eq.s32.totalorder %s32, 1
      %p186 = por %p184, %p185
      %p187 = scmp.ne.s32.totalorder %s176, %s177
      %p188 = scmp.eq.s32.totalorder %s32, 0
      %p189 = por %p187, %p188
      %p190 = scmp.ne.s32.totalorder %s176, %s177
      %p191 = scmp.eq.s32.totalorder %s33, 1
      %p192 = por %p190, %p191
      %p194 = scmp.ne.s32.totalorder %s177, %s193
      %p195 = scmp.eq.s32.totalorder %s33, 0
      %p196 = por %p194, %p195
      %s197 = ssub.s32 %s27, %s34
      %p198 = scmp.eq.s32.totalorder %s197, 0
      %s200 = sadd.s32 %s199, 1
      %s201 = scalar_select %p198, %s199, %s200
      %p204 = pneg %p198
      %p205 = scmp.eq.s32.totalorder %s27, 1
      %p206 = por %p204, %p205
      %p207 = scmp.ne.s32.totalorder %s199, %s202
      %p208 = scmp.eq.s32.totalorder %s27, 0
      %p209 = por %p207, %p208
      %p210 = scmp.ne.s32.totalorder %s199, %s202
      %p211 = scmp.eq.s32.totalorder %s32, 1
      %p212 = por %p210, %p211
      %p213 = scmp.ne.s32.totalorder %s202, %s203
      %p214 = scmp.eq.s32.totalorder %s32, 0
      %p215 = por %p213, %p214
      %p216 = scmp.ne.s32.totalorder %s202, %s203
      %p217 = scmp.eq.s32.totalorder %s33, 1
      %p218 = por %p216, %p217
      %p220 = scmp.ne.s32.totalorder %s203, %s219
      %p221 = scmp.eq.s32.totalorder %s33, 0
      %p222 = por %p220, %p221
      %p223 = scmp.le.s32.totalorder 1, %s27
      %p224 = scmp.lt.s32.totalorder %s27, 3
      %p225 = pnand %p223, %p224
      %p226 = pneg %p225
      // Predicated region
      $region9: #{tpu_custom_call.1} parent=5 // pred_check
        _
      $region10: #{tpu_custom_call.1} parent=5 // pred_check_branch
        %228 = sbr.rel (%p225) target = $region12
      $region11: #{tpu_custom_call.1} parent=5 // pred_region
        %s229 = ssub.s32 %s27, 1
        // Predicated region
        $region13: #{tpu_custom_call.1} parent=11 // pred_check
          %p230 = pneg %p100
        $region14: #{tpu_custom_call.1} parent=11 // pred_check_branch
          %232 = sbr.rel (%p230) target = $region16
        $region15: #{tpu_custom_call.1} parent=11 // pred_region
          %s234 = ssub.s32 1024, 1024
          %235 = vsyncadd [#allocation6], %s234
          %s236 = sshll.u32 [#allocation7], 4
          %s237 = int_to_ptr.vmem [resolvable:$true] %s236
          %242 = dma.hbm_to_vmem [thread:$0]  %s2, 1024, %s237, [#allocation6], 64, 64, 4
        $region16: #{tpu_custom_call.1} parent=11 // pred_fallthru
          _
        // Predicated region
        $region17: #{tpu_custom_call.1} parent=11 // pred_check
          %p243 = pneg %p121
        $region18: #{tpu_custom_call.1} parent=11 // pred_check_branch
          %245 = sbr.rel (%p243) target = $region20
        $region19: #{tpu_custom_call.1} parent=11 // pred_region
          %s247 = ssub.s32 1024, 1024
          %248 = vsyncadd [#allocation9], %s247
          %s249 = sshll.u32 [#allocation8], 4
          %s250 = int_to_ptr.vmem [resolvable:$true] %s249
          %255 = dma.hbm_to_vmem [thread:$0]  %s3, 1024, %s250, [#allocation9], 64, 64, 4
        $region20: #{tpu_custom_call.1} parent=11 // pred_fallthru
          _
        // Predicated region
        $region21: #{tpu_custom_call.1} parent=11 // pred_check
          %p256 = pneg %p142
        $region22: #{tpu_custom_call.1} parent=11 // pred_check_branch
          %258 = sbr.rel (%p256) target = $region24
        $region23: #{tpu_custom_call.1} parent=11 // pred_region
          _
        $region24: #{tpu_custom_call.1} parent=11 // pred_fallthru
          _
        // Predicated region
        $region25: #{tpu_custom_call.1} parent=11 // pred_check
          %p259 = pneg %p163
        $region26: #{tpu_custom_call.1} parent=11 // pred_check_branch
          %261 = sbr.rel (%p259) target = $region28
        $region27: #{tpu_custom_call.1} parent=11 // pred_region
          _
        $region28: #{tpu_custom_call.1} parent=11 // pred_fallthru
          _
      $region12: #{tpu_custom_call.1} parent=5 // pred_fallthru
        _
      %p262 = scmp.lt.s32.totalorder %s27, 2
      // Predicated region
      $region29: #{tpu_custom_call.1} parent=5 // pred_check
        %p263 = pneg %p262
      $region30: #{tpu_custom_call.1} parent=5 // pred_check_branch
        %265 = sbr.rel (%p263) target = $region32
      $region31: #{tpu_custom_call.1} parent=5 // pred_region
        // Predicated region
        $region33: #{tpu_custom_call.1} parent=31 // pred_check
          %p266 = pneg %p47
        $region34: #{tpu_custom_call.1} parent=31 // pred_check_branch
          %268 = sbr.rel (%p266) target = $region36
        $region35: #{tpu_custom_call.1} parent=31 // pred_region
          %s269 = sand.u32 %s37, 1
          %s270 = scalar_lea.sflag [#allocation3], %s269
          %s271 = sand.u32 %s37, 1
          %s272 = smul.addr %s271, 64
          %s273 = scalar_lea.vmem [#allocation2], %s272
          %s275 = ssub.s32 1024, 1024
          %276 = vsyncadd %s270, %s275
          %s277 = smul.addr %s27, 16
          %s278 = smul.addr %s277, 64
          %s279 = scalar_lea.hbm %s0, %s278
          %s280 = sshll.u32 %s273, 4
          %s281 = int_to_ptr.vmem [resolvable:$true] %s280
          %286 = dma.hbm_to_vmem [thread:$0]  %s279, 1024, %s281, %s270, 64, 64, 4
        $region36: #{tpu_custom_call.1} parent=31 // pred_fallthru
          _
        // Predicated region
        $region37: #{tpu_custom_call.1} parent=31 // pred_check
          %p287 = pneg %p73
        $region38: #{tpu_custom_call.1} parent=31 // pred_check_branch
          %289 = sbr.rel (%p287) target = $region40
        $region39: #{tpu_custom_call.1} parent=31 // pred_region
          %s290 = sand.u32 %s27, 1
          %s291 = scalar_lea.sflag [#allocation6], %s290
          %s292 = sand.u32 %s63, 1
          %s293 = smul.addr %s292, 64
          %s294 = scalar_lea.vmem [#allocation5], %s293
          %s296 = ssub.s32 1024, 1024
          %297 = vsyncadd %s291, %s296
          %s298 = smul.addr %s27, 16
          %s299 = smul.addr %s298, 64
          %s300 = scalar_lea.hbm %s1, %s299
          %s301 = sshll.u32 %s294, 4
          %s302 = int_to_ptr.vmem [resolvable:$true] %s301
          %307 = dma.hbm_to_vmem [thread:$0]  %s300, 1024, %s302, %s291, 64, 64, 4
        $region40: #{tpu_custom_call.1} parent=31 // pred_fallthru
          _
      $region32: #{tpu_custom_call.1} parent=5 // pred_fallthru
        _
      %p308 = scmp.le.s32.totalorder 1, %s27
      %p309 = scmp.lt.s32.totalorder %s27, 3
      %p310 = pnand %p308, %p309
      %p311 = pneg %p310
      // Predicated region
      $region41: #{tpu_custom_call.1} parent=5 // pred_check
        _
      $region42: #{tpu_custom_call.1} parent=5 // pred_check_branch
        %313 = sbr.rel (%p310) target = $region44
      $region43: #{tpu_custom_call.1} parent=5 // pred_region
        %s314 = ssub.s32 %s27, 1
        %s315 = sand.u32 %s40, 1
        %s316 = scalar_lea.sflag [#allocation3], %s315
        %s317 = sand.u32 %s40, 1
        %s318 = smul.addr %s317, 64
        %s319 = scalar_lea.vmem [#allocation2], %s318
        // Predicated region
        $region45: #{tpu_custom_call.1} parent=43 // pred_check
          %p320 = pneg %p53
        $region46: #{tpu_custom_call.1} parent=43 // pred_check_branch
          %322 = sbr.rel (%p320) target = $region48
        $region47: #{tpu_custom_call.1} parent=43 // pred_region
          %323 = dma.done %s316, 1024
        $region48: #{tpu_custom_call.1} parent=43 // pred_fallthru
          _
        %s324 = sand.u32 %s32, 1
        %s325 = scalar_lea.sflag [#allocation6], %s324
        %s326 = sand.u32 %s66, 1
        %s327 = smul.addr %s326, 64
        %s328 = scalar_lea.vmem [#allocation5], %s327
        // Predicated region
        $region49: #{tpu_custom_call.1} parent=43 // pred_check
          %p329 = pneg %p79
        $region50: #{tpu_custom_call.1} parent=43 // pred_check_branch
          %331 = sbr.rel (%p329) target = $region52
        $region51: #{tpu_custom_call.1} parent=43 // pred_region
          %332 = dma.done %s325, 1024
        $region52: #{tpu_custom_call.1} parent=43 // pred_fallthru
          _
        // Predicated region
        $region53: #{tpu_custom_call.1} parent=43 // pred_check
          %p333 = pneg %p100
        $region54: #{tpu_custom_call.1} parent=43 // pred_check_branch
          %335 = sbr.rel (%p333) target = $region56
        $region55: #{tpu_custom_call.1} parent=43 // pred_region
          %336 = dma.done [#allocation6], 1024
        $region56: #{tpu_custom_call.1} parent=43 // pred_fallthru
          _
        // Predicated region
        $region57: #{tpu_custom_call.1} parent=43 // pred_check
          %p337 = pneg %p121
        $region58: #{tpu_custom_call.1} parent=43 // pred_check_branch
          %339 = sbr.rel (%p337) target = $region60
        $region59: #{tpu_custom_call.1} parent=43 // pred_region
          %340 = dma.done [#allocation9], 1024
        $region60: #{tpu_custom_call.1} parent=43 // pred_fallthru
          _
        %s341 = sand.u32 %s40, 1
        %s342 = scalar_lea.sflag [#allocation3], %s341
        %s343 = sand.u32 %s40, 1
        %s344 = smul.addr %s343, 64
        %s345 = scalar_lea.vmem [#allocation2], %s344
        %p346 = pneg %p53
        %p347 = pneg %p50
        %s348 = sand.u32 %s32, 1
        %s349 = scalar_lea.sflag [#allocation6], %s348
        %s350 = sand.u32 %s66, 1
        %s351 = smul.addr %s350, 64
        %s352 = scalar_lea.vmem [#allocation5], %s351
        %p353 = pneg %p79
        %p354 = pneg %p76
        %p355 = pneg %p100
        %p356 = pneg %p97
        %p357 = pneg %p121
        %p358 = pneg %p118
        %p359 = pneg %p142
        %p360 = pneg %p139
        %p361 = pneg %p163
        %p362 = pneg %p160
        %p363 = pneg %p189
        %p364 = pneg %p186
        %s365 = sand.u32 %s176, 1
        %s366 = scalar_lea.sflag [#allocation4], %s365
        %s367 = sand.u32 %s176, 1
        %s368 = smul.addr %s367, 64
        %s369 = scalar_lea.vmem [#allocation10], %s368
        %p370 = pneg %p215
        %p371 = pneg %p212
        %s372 = sand.u32 %s202, 1
        %s373 = scalar_lea.sflag [#allocation12], %s372
        %s374 = sand.u32 %s202, 1
        %s375 = smul.addr %s374, 64
        %s376 = scalar_lea.vmem [#allocation11], %s375
        %v378 = vld [vmem:[%s319] sm:$0xf]
        %v379 = vld [vmem:[%s319 + $0x4] sm:$0xf]
        %v380 = vld [vmem:[%s319 + $0x8] sm:$0xf]
        %v381 = vld [vmem:[%s319 + $0xc] sm:$0xf]
        %v382 = vld [vmem:[%s319 + $0x10] sm:$0xf]
        %v383 = vld [vmem:[%s319 + $0x14] sm:$0xf]
        %v384 = vld [vmem:[%s319 + $0x18] sm:$0xf]
        %v385 = vld [vmem:[%s319 + $0x1c] sm:$0xf]
        %v386 = vld [vmem:[%s319 + $0x20] sm:$0xf]
        %v387 = vld [vmem:[%s319 + $0x24] sm:$0xf]
        %v388 = vld [vmem:[%s319 + $0x28] sm:$0xf]
        %v389 = vld [vmem:[%s319 + $0x2c] sm:$0xf]
        %v390 = vld [vmem:[%s319 + $0x30] sm:$0xf]
        %v391 = vld [vmem:[%s319 + $0x34] sm:$0xf]
        %v392 = vld [vmem:[%s319 + $0x38] sm:$0xf]
        %v393 = vld [vmem:[%s319 + $0x3c] sm:$0xf]
        %v394 = vld [vmem:[%s328] sm:$0xf]
        %v395 = vld [vmem:[%s328 + $0x4] sm:$0xf]
        %v396 = vld [vmem:[%s328 + $0x8] sm:$0xf]
        %v397 = vld [vmem:[%s328 + $0xc] sm:$0xf]
        %v398 = vld [vmem:[%s328 + $0x10] sm:$0xf]
        %v399 = vld [vmem:[%s328 + $0x14] sm:$0xf]
        %v400 = vld [vmem:[%s328 + $0x18] sm:$0xf]
        %v401 = vld [vmem:[%s328 + $0x1c] sm:$0xf]
        %v402 = vld [vmem:[%s328 + $0x20] sm:$0xf]
        %v403 = vld [vmem:[%s328 + $0x24] sm:$0xf]
        %v404 = vld [vmem:[%s328 + $0x28] sm:$0xf]
        %v405 = vld [vmem:[%s328 + $0x2c] sm:$0xf]
        %v406 = vld [vmem:[%s328 + $0x30] sm:$0xf]
        %v407 = vld [vmem:[%s328 + $0x34] sm:$0xf]
        %v408 = vld [vmem:[%s328 + $0x38] sm:$0xf]
        %v409 = vld [vmem:[%s328 + $0x3c] sm:$0xf]
        %v410 = vld [vmem:[#allocation7] sm:$0xf]
        %v411 = vld [vmem:[#allocation7 + $0x4] sm:$0xf]
        %v412 = vld [vmem:[#allocation7 + $0x8] sm:$0xf]
        %v413 = vld [vmem:[#allocation7 + $0xc] sm:$0xf]
        %v414 = vld [vmem:[#allocation7 + $0x10] sm:$0xf]
        %v415 = vld [vmem:[#allocation7 + $0x14] sm:$0xf]
        %v416 = vld [vmem:[#allocation7 + $0x18] sm:$0xf]
        %v417 = vld [vmem:[#allocation7 + $0x1c] sm:$0xf]
        %v418 = vld [vmem:[#allocation7 + $0x20] sm:$0xf]
        %v419 = vld [vmem:[#allocation7 + $0x24] sm:$0xf]
        %v420 = vld [vmem:[#allocation7 + $0x28] sm:$0xf]
        %v421 = vld [vmem:[#allocation7 + $0x2c] sm:$0xf]
        %v422 = vld [vmem:[#allocation7 + $0x30] sm:$0xf]
        %v423 = vld [vmem:[#allocation7 + $0x34] sm:$0xf]
        %v424 = vld [vmem:[#allocation7 + $0x38] sm:$0xf]
        %v425 = vld [vmem:[#allocation7 + $0x3c] sm:$0xf]
        %v426 = vld [vmem:[%s4] sm:$0x1]
        %v428 = vlaneseq
        %v429 = vshrl.u32 %v428, 7
        %v430 = vsub.s32 0, %v429
        %v431 = vrot.slane %v426, %v430
        %v449 = vunpack.c.l.b16 %v378
        %v450 = vunpack.c.l.b16 %v379
        %v451 = vunpack.c.l.b16 %v380
        %v452 = vunpack.c.l.b16 %v381
        %v453 = vunpack.c.l.b16 %v382
        %v454 = vunpack.c.l.b16 %v383
        %v455 = vunpack.c.l.b16 %v384
        %v456 = vunpack.c.l.b16 %v385
        %v457 = vunpack.c.l.b16 %v386
        %v458 = vunpack.c.l.b16 %v387
        %v459 = vunpack.c.l.b16 %v388
        %v460 = vunpack.c.l.b16 %v389
        %v461 = vunpack.c.l.b16 %v390
        %v462 = vunpack.c.l.b16 %v391
        %v463 = vunpack.c.l.b16 %v392
        %v464 = vunpack.c.l.b16 %v393
        %v465 = vpack.c.b16 %v450, %v449
        %v466 = vpack.c.b16 %v452, %v451
        %v467 = vpack.c.b16 %v454, %v453
        %v468 = vpack.c.b16 %v456, %v455
        %v469 = vpack.c.b16 %v458, %v457
        %v470 = vpack.c.b16 %v460, %v459
        %v471 = vpack.c.b16 %v462, %v461
        %v472 = vpack.c.b16 %v464, %v463
        %v497 = vunpack.c.l.b16 %v410
        %v498 = vunpack.c.l.b16 %v411
        %v499 = vunpack.c.l.b16 %v412
        %v500 = vunpack.c.l.b16 %v413
        %v501 = vunpack.c.l.b16 %v414
        %v502 = vunpack.c.l.b16 %v415
        %v503 = vunpack.c.l.b16 %v416
        %v504 = vunpack.c.l.b16 %v417
        %v505 = vunpack.c.l.b16 %v418
        %v506 = vunpack.c.l.b16 %v419
        %v507 = vunpack.c.l.b16 %v420
        %v508 = vunpack.c.l.b16 %v421
        %v509 = vunpack.c.l.b16 %v422
        %v510 = vunpack.c.l.b16 %v423
        %v511 = vunpack.c.l.b16 %v424
        %v512 = vunpack.c.l.b16 %v425
        %v513 = vpack.c.b16 %v498, %v497
        %v514 = vpack.c.b16 %v500, %v499
        %v515 = vpack.c.b16 %v502, %v501
        %v516 = vpack.c.b16 %v504, %v503
        %v517 = vpack.c.b16 %v506, %v505
        %v518 = vpack.c.b16 %v508, %v507
        %v519 = vpack.c.b16 %v510, %v509
        %v520 = vpack.c.b16 %v512, %v511
        %529 = vmatprep.subr.bf16.mxu0 0
        %530 = vmatpush1.bf16.msra.mxu0 %v513
        %531 = vmatprep.subr.bf16.mxu0 0
        %532 = vmatpush1.bf16.msra.mxu0 %v514
        %533 = vmatprep.subr.bf16.mxu0 0
        %534 = vmatpush1.bf16.msra.mxu0 %v515
        %535 = vmatprep.subr.bf16.mxu0 0
        %536 = vmatpush1.bf16.msra.mxu0 %v516
        %537 = vmatprep.subr.bf16.mxu0 0
        %538 = vmatpush1.bf16.msra.mxu0 %v517
        %539 = vmatprep.subr.bf16.mxu0 0
        %540 = vmatpush1.bf16.msra.mxu0 %v518
        %541 = vmatprep.subr.bf16.mxu0 0
        %542 = vmatpush1.bf16.msra.mxu0 %v519
        %543 = vmatprep.subr.bf16.mxu0 0
        %544 = vmatpush1.bf16.msra.mxu0 %v520
        %545 = vmatprep.subr.bf16.mxu0 0
        %546 = vmatpush1.bf16.msra.mxu0 0
        %547 = vmatprep.subr.bf16.mxu0 0
        %548 = vmatpush1.bf16.msra.mxu0 0
        %549 = vmatprep.subr.bf16.mxu0 0
        %550 = vmatpush1.bf16.msra.mxu0 0
        %551 = vmatprep.subr.bf16.mxu0 0
        %552 = vmatpush1.bf16.msra.mxu0 0
        %553 = vmatprep.subr.bf16.mxu0 0
        %554 = vmatpush1.bf16.msra.mxu0 0
        %555 = vmatprep.subr.bf16.mxu0 0
        %556 = vmatpush1.bf16.msra.mxu0 0
        %557 = vmatprep.subr.bf16.mxu0 0
        %558 = vmatpush1.bf16.msra.mxu0 0
        %559 = vmatprep.subr.bf16.mxu0 0
        %560 = vmatpush1.bf16.msra.mxu0 0
        %561 = vmatprep.mubr.bf16.mxu0 0
        %562 = vmatmul.mubr.bf16.gmra.mrb[0].mxu0 %v465
        %v563 = vpop.f32.mrb[0].mxu0
        %v564 = vadd.f32 %v431, %v563
        %v565 = vpop.f32.mrb[0].mxu0
        %v566 = vpop.f32.mrb[0].mxu0
        %v567 = vadd.f32 %v431, %v566
        %v568 = vpop.f32.mrb[0].mxu0
        %569 = vmatprep.mubr.bf16.mxu0 0
        %570 = vmatmul.mubr.bf16.gmra.mrb[0].mxu0 %v466
        %v571 = vpop.f32.mrb[0].mxu0
        %v572 = vadd.f32 %v431, %v571
        %v573 = vpop.f32.mrb[0].mxu0
        %v574 = vpop.f32.mrb[0].mxu0
        %v575 = vadd.f32 %v431, %v574
        %v576 = vpop.f32.mrb[0].mxu0
        %577 = vmatprep.mubr.bf16.mxu0 0
        %578 = vmatmul.mubr.bf16.gmra.mrb[0].mxu0 %v467
        %v579 = vpop.f32.mrb[0].mxu0
        %v580 = vadd.f32 %v431, %v579
        %v581 = vpop.f32.mrb[0].mxu0
        %v582 = vpop.f32.mrb[0].mxu0
        %v583 = vadd.f32 %v431, %v582
        %v584 = vpop.f32.mrb[0].mxu0
        %585 = vmatprep.mubr.bf16.mxu0 0
        %586 = vmatmul.mubr.bf16.gmra.mrb[0].mxu0 %v468
        %v587 = vpop.f32.mrb[0].mxu0
        %v588 = vadd.f32 %v431, %v587
        %v589 = vpop.f32.mrb[0].mxu0
        %v590 = vpop.f32.mrb[0].mxu0
        %v591 = vadd.f32 %v431, %v590
        %v592 = vpop.f32.mrb[0].mxu0
        %593 = vmatprep.mubr.bf16.mxu0 0
        %594 = vmatmul.mubr.bf16.gmra.mrb[0].mxu0 %v469
        %v595 = vpop.f32.mrb[0].mxu0
        %v596 = vadd.f32 %v431, %v595
        %v597 = vpop.f32.mrb[0].mxu0
        %v598 = vpop.f32.mrb[0].mxu0
        %v599 = vadd.f32 %v431, %v598
        %v600 = vpop.f32.mrb[0].mxu0
        %601 = vmatprep.mubr.bf16.mxu0 0
        %602 = vmatmul.mubr.bf16.gmra.mrb[0].mxu0 %v470
        %v603 = vpop.f32.mrb[0].mxu0
        %v604 = vadd.f32 %v431, %v603
        %v605 = vpop.f32.mrb[0].mxu0
        %v606 = vpop.f32.mrb[0].mxu0
        %v607 = vadd.f32 %v431, %v606
        %v608 = vpop.f32.mrb[0].mxu0
        %609 = vmatprep.mubr.bf16.mxu0 0
        %610 = vmatmul.mubr.bf16.gmra.mrb[0].mxu0 %v471
        %v611 = vpop.f32.mrb[0].mxu0
        %v612 = vadd.f32 %v431, %v611
        %v613 = vpop.f32.mrb[0].mxu0
        %v614 = vpop.f32.mrb[0].mxu0
        %v615 = vadd.f32 %v431, %v614
        %v616 = vpop.f32.mrb[0].mxu0
        %617 = vmatprep.mubr.bf16.mxu0 0
        %618 = vmatmul.mubr.bf16.gmra.mrb[0].mxu0 %v472
        %v619 = vpop.f32.mrb[0].mxu0
        %v620 = vadd.f32 %v431, %v619
        %v621 = vpop.f32.mrb[0].mxu0
        %v622 = vpop.f32.mrb[0].mxu0
        %v623 = vadd.f32 %v431, %v622
        %v624 = vpop.f32.mrb[0].mxu0
        %625 = vdwg.mxu0
        %v626 = vld [vmem:[#allocation8] sm:$0xf]
        %v627 = vld [vmem:[#allocation8 + $0x4] sm:$0xf]
        %v628 = vld [vmem:[#allocation8 + $0x8] sm:$0xf]
        %v629 = vld [vmem:[#allocation8 + $0xc] sm:$0xf]
        %v630 = vld [vmem:[#allocation8 + $0x10] sm:$0xf]
        %v631 = vld [vmem:[#allocation8 + $0x14] sm:$0xf]
        %v632 = vld [vmem:[#allocation8 + $0x18] sm:$0xf]
        %v633 = vld [vmem:[#allocation8 + $0x1c] sm:$0xf]
        %v634 = vld [vmem:[#allocation8 + $0x20] sm:$0xf]
        %v635 = vld [vmem:[#allocation8 + $0x24] sm:$0xf]
        %v636 = vld [vmem:[#allocation8 + $0x28] sm:$0xf]
        %v637 = vld [vmem:[#allocation8 + $0x2c] sm:$0xf]
        %v638 = vld [vmem:[#allocation8 + $0x30] sm:$0xf]
        %v639 = vld [vmem:[#allocation8 + $0x34] sm:$0xf]
        %v640 = vld [vmem:[#allocation8 + $0x38] sm:$0xf]
        %v641 = vld [vmem:[#allocation8 + $0x3c] sm:$0xf]
        %v642 = vld [vmem:[%s5] sm:$0x1]
        %v644 = vlaneseq
        %v645 = vshrl.u32 %v644, 7
        %v646 = vsub.s32 0, %v645
        %v647 = vrot.slane %v642, %v646
        %v665 = vunpack.c.l.b16 %v394
        %v666 = vunpack.c.l.b16 %v395
        %v667 = vunpack.c.l.b16 %v396
        %v668 = vunpack.c.l.b16 %v397
        %v669 = vunpack.c.l.b16 %v398
        %v670 = vunpack.c.l.b16 %v399
        %v671 = vunpack.c.l.b16 %v400
        %v672 = vunpack.c.l.b16 %v401
        %v673 = vunpack.c.l.b16 %v402
        %v674 = vunpack.c.l.b16 %v403
        %v675 = vunpack.c.l.b16 %v404
        %v676 = vunpack.c.l.b16 %v405
        %v677 = vunpack.c.l.b16 %v406
        %v678 = vunpack.c.l.b16 %v407
        %v679 = vunpack.c.l.b16 %v408
        %v680 = vunpack.c.l.b16 %v409
        %v681 = vpack.c.b16 %v666, %v665
        %v682 = vpack.c.b16 %v668, %v667
        %v683 = vpack.c.b16 %v670, %v669
        %v684 = vpack.c.b16 %v672, %v671
        %v685 = vpack.c.b16 %v674, %v673
        %v686 = vpack.c.b16 %v676, %v675
        %v687 = vpack.c.b16 %v678, %v677
        %v688 = vpack.c.b16 %v680, %v679
        %v713 = vunpack.c.l.b16 %v626
        %v714 = vunpack.c.l.b16 %v627
        %v715 = vunpack.c.l.b16 %v628
        %v716 = vunpack.c.l.b16 %v629
        %v717 = vunpack.c.l.b16 %v630
        %v718 = vunpack.c.l.b16 %v631
        %v719 = vunpack.c.l.b16 %v632
        %v720 = vunpack.c.l.b16 %v633
        %v721 = vunpack.c.l.b16 %v634
        %v722 = vunpack.c.l.b16 %v635
        %v723 = vunpack.c.l.b16 %v636
        %v724 = vunpack.c.l.b16 %v637
        %v725 = vunpack.c.l.b16 %v638
        %v726 = vunpack.c.l.b16 %v639
        %v727 = vunpack.c.l.b16 %v640
        %v728 = vunpack.c.l.b16 %v641
        %v729 = vpack.c.b16 %v714, %v713
        %v730 = vpack.c.b16 %v716, %v715
        %v731 = vpack.c.b16 %v718, %v717
        %v732 = vpack.c.b16 %v720, %v719
        %v733 = vpack.c.b16 %v722, %v721
        %v734 = vpack.c.b16 %v724, %v723
        %v735 = vpack.c.b16 %v726, %v725
        %v736 = vpack.c.b16 %v728, %v727
        %745 = vmatprep.subr.bf16.mxu0 0
        %746 = vmatpush1.bf16.msra.mxu0 %v729
        %747 = vmatprep.subr.bf16.mxu0 0
        %748 = vmatpush1.bf16.msra.mxu0 %v730
        %749 = vmatprep.subr.bf16.mxu0 0
        %750 = vmatpush1.bf16.msra.mxu0 %v731
        %751 = vmatprep.subr.bf16.mxu0 0
        %752 = vmatpush1.bf16.msra.mxu0 %v732
        %753 = vmatprep.subr.bf16.mxu0 0
        %754 = vmatpush1.bf16.msra.mxu0 %v733
        %755 = vmatprep.subr.bf16.mxu0 0
        %756 = vmatpush1.bf16.msra.mxu0 %v734
        %757 = vmatprep.subr.bf16.mxu0 0
        %758 = vmatpush1.bf16.msra.mxu0 %v735
        %759 = vmatprep.subr.bf16.mxu0 0
        %760 = vmatpush1.bf16.msra.mxu0 %v736
        %761 = vmatprep.subr.bf16.mxu0 0
        %762 = vmatpush1.bf16.msra.mxu0 0
        %763 = vmatprep.subr.bf16.mxu0 0
        %764 = vmatpush1.bf16.msra.mxu0 0
        %765 = vmatprep.subr.bf16.mxu0 0
        %766 = vmatpush1.bf16.msra.mxu0 0
        %767 = vmatprep.subr.bf16.mxu0 0
        %768 = vmatpush1.bf16.msra.mxu0 0
        %769 = vmatprep.subr.bf16.mxu0 0
        %770 = vmatpush1.bf16.msra.mxu0 0
        %771 = vmatprep.subr.bf16.mxu0 0
        %772 = vmatpush1.bf16.msra.mxu0 0
        %773 = vmatprep.subr.bf16.mxu0 0
        %774 = vmatpush1.bf16.msra.mxu0 0
        %775 = vmatprep.subr.bf16.mxu0 0
        %776 = vmatpush1.bf16.msra.mxu0 0
        %777 = vmatprep.mubr.bf16.mxu0 0
        %778 = vmatmul.mubr.bf16.gmra.mrb[0].mxu0 %v681
        %v779 = vpop.f32.mrb[0].mxu0
        %v780 = vadd.f32 %v647, %v779
        %v781 = vpop.f32.mrb[0].mxu0
        %v782 = vpop.f32.mrb[0].mxu0
        %v783 = vadd.f32 %v647, %v782
        %v784 = vpop.f32.mrb[0].mxu0
        %785 = vmatprep.mubr.bf16.mxu0 0
        %786 = vmatmul.mubr.bf16.gmra.mrb[0].mxu0 %v682
        %v787 = vpop.f32.mrb[0].mxu0
        %v788 = vadd.f32 %v647, %v787
        %v789 = vpop.f32.mrb[0].mxu0
        %v790 = vpop.f32.mrb[0].mxu0
        %v791 = vadd.f32 %v647, %v790
        %v792 = vpop.f32.mrb[0].mxu0
        %793 = vmatprep.mubr.bf16.mxu0 0
        %794 = vmatmul.mubr.bf16.gmra.mrb[0].mxu0 %v683
        %v795 = vpop.f32.mrb[0].mxu0
        %v796 = vadd.f32 %v647, %v795
        %v797 = vpop.f32.mrb[0].mxu0
        %v798 = vpop.f32.mrb[0].mxu0
        %v799 = vadd.f32 %v647, %v798
        %v800 = vpop.f32.mrb[0].mxu0
        %801 = vmatprep.mubr.bf16.mxu0 0
        %802 = vmatmul.mubr.bf16.gmra.mrb[0].mxu0 %v684
        %v803 = vpop.f32.mrb[0].mxu0
        %v804 = vadd.f32 %v647, %v803
        %v805 = vpop.f32.mrb[0].mxu0
        %v806 = vpop.f32.mrb[0].mxu0
        %v807 = vadd.f32 %v647, %v806
        %v808 = vpop.f32.mrb[0].mxu0
        %809 = vmatprep.mubr.bf16.mxu0 0
        %810 = vmatmul.mubr.bf16.gmra.mrb[0].mxu0 %v685
        %v811 = vpop.f32.mrb[0].mxu0
        %v812 = vadd.f32 %v647, %v811
        %v813 = vpop.f32.mrb[0].mxu0
        %v814 = vpop.f32.mrb[0].mxu0
        %v815 = vadd.f32 %v647, %v814
        %v816 = vpop.f32.mrb[0].mxu0
        %817 = vmatprep.mubr.bf16.mxu0 0
        %818 = vmatmul.mubr.bf16.gmra.mrb[0].mxu0 %v686
        %v819 = vpop.f32.mrb[0].mxu0
        %v820 = vadd.f32 %v647, %v819
        %v821 = vpop.f32.mrb[0].mxu0
        %v822 = vpop.f32.mrb[0].mxu0
        %v823 = vadd.f32 %v647, %v822
        %v824 = vpop.f32.mrb[0].mxu0
        %825 = vmatprep.mubr.bf16.mxu0 0
        %826 = vmatmul.mubr.bf16.gmra.mrb[0].mxu0 %v687
        %v827 = vpop.f32.mrb[0].mxu0
        %v828 = vadd.f32 %v647, %v827
        %v829 = vpop.f32.mrb[0].mxu0
        %v830 = vpop.f32.mrb[0].mxu0
        %v831 = vadd.f32 %v647, %v830
        %v832 = vpop.f32.mrb[0].mxu0
        %833 = vmatprep.mubr.bf16.mxu0 0
        %834 = vmatmul.mubr.bf16.gmra.mrb[0].mxu0 %v688
        %v835 = vpop.f32.mrb[0].mxu0
        %v836 = vadd.f32 %v647, %v835
        %v837 = vpop.f32.mrb[0].mxu0
        %v838 = vpop.f32.mrb[0].mxu0
        %v839 = vadd.f32 %v647, %v838
        %v840 = vpop.f32.mrb[0].mxu0
        %841 = vdwg.mxu0
        %v842 = vpack.c.bf16 %v567, %v564
        %v843 = vpack.c.bf16 %v575, %v572
        %v844 = vpack.c.bf16 %v583, %v580
        %v845 = vpack.c.bf16 %v591, %v588
        %v846 = vpack.c.bf16 %v599, %v596
        %v847 = vpack.c.bf16 %v607, %v604
        %v848 = vpack.c.bf16 %v615, %v612
        %v849 = vpack.c.bf16 %v623, %v620
        %v858 = vunpack.c.l.b16 %v842
        %v859 = vunpack.c.h.b16 %v842
        %v860 = vunpack.c.l.b16 %v843
        %v861 = vunpack.c.h.b16 %v843
        %v862 = vunpack.c.l.b16 %v844
        %v863 = vunpack.c.h.b16 %v844
        %v864 = vunpack.c.l.b16 %v845
        %v865 = vunpack.c.h.b16 %v845
        %v866 = vunpack.c.l.b16 %v846
        %v867 = vunpack.c.h.b16 %v846
        %v868 = vunpack.c.l.b16 %v847
        %v869 = vunpack.c.h.b16 %v847
        %v870 = vunpack.c.l.b16 %v848
        %v871 = vunpack.c.h.b16 %v848
        %v872 = vunpack.c.l.b16 %v849
        %v873 = vunpack.c.h.b16 %v849
        %v874 = vpack.c.b16 %v858, %v858
        %v875 = vpack.c.b16 %v859, %v859
        %v876 = vpack.c.b16 %v860, %v860
        %v877 = vpack.c.b16 %v861, %v861
        %v878 = vpack.c.b16 %v862, %v862
        %v879 = vpack.c.b16 %v863, %v863
        %v880 = vpack.c.b16 %v864, %v864
        %v881 = vpack.c.b16 %v865, %v865
        %v882 = vpack.c.b16 %v866, %v866
        %v883 = vpack.c.b16 %v867, %v867
        %v884 = vpack.c.b16 %v868, %v868
        %v885 = vpack.c.b16 %v869, %v869
        %v886 = vpack.c.b16 %v870, %v870
        %v887 = vpack.c.b16 %v871, %v871
        %v888 = vpack.c.b16 %v872, %v872
        %v889 = vpack.c.b16 %v873, %v873
        %906 = vst [vmem:[%s369] sm:$0xf] %v874
        %907 = vst [vmem:[%s369 + $0x4] sm:$0xf] %v875
        %908 = vst [vmem:[%s369 + $0x8] sm:$0xf] %v876
        %909 = vst [vmem:[%s369 + $0xc] sm:$0xf] %v877
        %910 = vst [vmem:[%s369 + $0x10] sm:$0xf] %v878
        %911 = vst [vmem:[%s369 + $0x14] sm:$0xf] %v879
        %912 = vst [vmem:[%s369 + $0x18] sm:$0xf] %v880
        %913 = vst [vmem:[%s369 + $0x1c] sm:$0xf] %v881
        %914 = vst [vmem:[%s369 + $0x20] sm:$0xf] %v882
        %915 = vst [vmem:[%s369 + $0x24] sm:$0xf] %v883
        %916 = vst [vmem:[%s369 + $0x28] sm:$0xf] %v884
        %917 = vst [vmem:[%s369 + $0x2c] sm:$0xf] %v885
        %918 = vst [vmem:[%s369 + $0x30] sm:$0xf] %v886
        %919 = vst [vmem:[%s369 + $0x34] sm:$0xf] %v887
        %920 = vst [vmem:[%s369 + $0x38] sm:$0xf] %v888
        %921 = vst [vmem:[%s369 + $0x3c] sm:$0xf] %v889
        %v922 = vpack.c.bf16 %v783, %v780
        %v923 = vpack.c.bf16 %v791, %v788
        %v924 = vpack.c.bf16 %v799, %v796
        %v925 = vpack.c.bf16 %v807, %v804
        %v926 = vpack.c.bf16 %v815, %v812
        %v927 = vpack.c.bf16 %v823, %v820
        %v928 = vpack.c.bf16 %v831, %v828
        %v929 = vpack.c.bf16 %v839, %v836
        %v938 = vunpack.c.l.b16 %v922
        %v939 = vunpack.c.h.b16 %v922
        %v940 = vunpack.c.l.b16 %v923
        %v941 = vunpack.c.h.b16 %v923
        %v942 = vunpack.c.l.b16 %v924
        %v943 = vunpack.c.h.b16 %v924
        %v944 = vunpack.c.l.b16 %v925
        %v945 = vunpack.c.h.b16 %v925
        %v946 = vunpack.c.l.b16 %v926
        %v947 = vunpack.c.h.b16 %v926
        %v948 = vunpack.c.l.b16 %v927
        %v949 = vunpack.c.h.b16 %v927
        %v950 = vunpack.c.l.b16 %v928
        %v951 = vunpack.c.h.b16 %v928
        %v952 = vunpack.c.l.b16 %v929
        %v953 = vunpack.c.h.b16 %v929
        %v954 = vpack.c.b16 %v938, %v938
        %v955 = vpack.c.b16 %v939, %v939
        %v956 = vpack.c.b16 %v940, %v940
        %v957 = vpack.c.b16 %v941, %v941
        %v958 = vpack.c.b16 %v942, %v942
        %v959 = vpack.c.b16 %v943, %v943
        %v960 = vpack.c.b16 %v944, %v944
        %v961 = vpack.c.b16 %v945, %v945
        %v962 = vpack.c.b16 %v946, %v946
        %v963 = vpack.c.b16 %v947, %v947
        %v964 = vpack.c.b16 %v948, %v948
        %v965 = vpack.c.b16 %v949, %v949
        %v966 = vpack.c.b16 %v950, %v950
        %v967 = vpack.c.b16 %v951, %v951
        %v968 = vpack.c.b16 %v952, %v952
        %v969 = vpack.c.b16 %v953, %v953
        %986 = vst [vmem:[%s376] sm:$0xf] %v954
        %987 = vst [vmem:[%s376 + $0x4] sm:$0xf] %v955
        %988 = vst [vmem:[%s376 + $0x8] sm:$0xf] %v956
        %989 = vst [vmem:[%s376 + $0xc] sm:$0xf] %v957
        %990 = vst [vmem:[%s376 + $0x10] sm:$0xf] %v958
        %991 = vst [vmem:[%s376 + $0x14] sm:$0xf] %v959
        %992 = vst [vmem:[%s376 + $0x18] sm:$0xf] %v960
        %993 = vst [vmem:[%s376 + $0x1c] sm:$0xf] %v961
        %994 = vst [vmem:[%s376 + $0x20] sm:$0xf] %v962
        %995 = vst [vmem:[%s376 + $0x24] sm:$0xf] %v963
        %996 = vst [vmem:[%s376 + $0x28] sm:$0xf] %v964
        %997 = vst [vmem:[%s376 + $0x2c] sm:$0xf] %v965
        %998 = vst [vmem:[%s376 + $0x30] sm:$0xf] %v966
        %999 = vst [vmem:[%s376 + $0x34] sm:$0xf] %v967
        %1000 = vst [vmem:[%s376 + $0x38] sm:$0xf] %v968
        %1001 = vst [vmem:[%s376 + $0x3c] sm:$0xf] %v969
        %s1002 = sand.u32 %s176, 1
        %s1003 = scalar_lea.sflag [#allocation4], %s1002
        %s1004 = sand.u32 %s176, 1
        %s1005 = smul.addr %s1004, 64
        %s1006 = scalar_lea.vmem [#allocation10], %s1005
        %s1007 = sand.u32 %s202, 1
        %s1008 = scalar_lea.sflag [#allocation12], %s1007
        %s1009 = sand.u32 %s202, 1
        %s1010 = smul.addr %s1009, 64
        %s1011 = scalar_lea.vmem [#allocation11], %s1010
        // Predicated region
        $region61: #{tpu_custom_call.1} parent=43 // pred_check
          %p1012 = pneg %p186
        $region62: #{tpu_custom_call.1} parent=43 // pred_check_branch
          %1014 = sbr.rel (%p1012) target = $region64
        $region63: #{tpu_custom_call.1} parent=43 // pred_region
          %s1016 = ssub.s32 1024, 1024
          %1017 = vsyncadd %s1003, %s1016
          %s1018 = smul.addr %s32, 16
          %s1019 = smul.addr %s1018, 64
          %s1020 = scalar_lea.hbm %s6, %s1019
          %s1021 = sshll.u32 %s1006, 4
          %s1022 = int_to_ptr.vmem [resolvable:$true] %s1021
          %1027 = dma.vmem_to_hbm [thread:$0]  %s1022, 1024, %s1020, %s1003, 64, 64, 4
        $region64: #{tpu_custom_call.1} parent=43 // pred_fallthru
          _
        // Predicated region
        $region65: #{tpu_custom_call.1} parent=43 // pred_check
          %p1028 = pneg %p212
        $region66: #{tpu_custom_call.1} parent=43 // pred_check_branch
          %1030 = sbr.rel (%p1028) target = $region68
        $region67: #{tpu_custom_call.1} parent=43 // pred_region
          %s1032 = ssub.s32 1024, 1024
          %1033 = vsyncadd %s1008, %s1032
          %s1034 = smul.addr %s32, 16
          %s1035 = smul.addr %s1034, 64
          %s1036 = scalar_lea.hbm %s7, %s1035
          %s1037 = sshll.u32 %s1011, 4
          %s1038 = int_to_ptr.vmem [resolvable:$true] %s1037
          %1043 = dma.vmem_to_hbm [thread:$0]  %s1038, 1024, %s1036, %s1008, 64, 64, 4
        $region68: #{tpu_custom_call.1} parent=43 // pred_fallthru
          _
      $region44: #{tpu_custom_call.1} parent=5 // pred_fallthru
        _
      %p1044 = scmp.le.s32.totalorder 2, %s27
      // Predicated region
      $region69: #{tpu_custom_call.1} parent=5 // pred_check
        %p1045 = pneg %p1044
      $region70: #{tpu_custom_call.1} parent=5 // pred_check_branch
        %1047 = sbr.rel (%p1045) target = $region72
      $region71: #{tpu_custom_call.1} parent=5 // pred_region
        %s1048 = ssub.s32 %s27, 2
        // Predicated region
        $region73: #{tpu_custom_call.1} parent=71 // pred_check
          %p1049 = pneg %p192
        $region74: #{tpu_custom_call.1} parent=71 // pred_check_branch
          %1051 = sbr.rel (%p1049) target = $region76
        $region75: #{tpu_custom_call.1} parent=71 // pred_region
          %s1052 = sand.u32 %s177, 1
          %s1053 = scalar_lea.sflag [#allocation4], %s1052
          %s1054 = sand.u32 %s177, 1
          %s1055 = smul.addr %s1054, 64
          %s1056 = scalar_lea.vmem [#allocation10], %s1055
          %1057 = dma.done %s1053, 1024
        $region76: #{tpu_custom_call.1} parent=71 // pred_fallthru
          _
        // Predicated region
        $region77: #{tpu_custom_call.1} parent=71 // pred_check
          %p1058 = pneg %p218
        $region78: #{tpu_custom_call.1} parent=71 // pred_check_branch
          %1060 = sbr.rel (%p1058) target = $region80
        $region79: #{tpu_custom_call.1} parent=71 // pred_region
          %s1061 = sand.u32 %s203, 1
          %s1062 = scalar_lea.sflag [#allocation12], %s1061
          %s1063 = sand.u32 %s203, 1
          %s1064 = smul.addr %s1063, 64
          %s1065 = scalar_lea.vmem [#allocation11], %s1064
          %1066 = dma.done %s1062, 1024
        $region80: #{tpu_custom_call.1} parent=71 // pred_fallthru
          _
      $region72: #{tpu_custom_call.1} parent=5 // pred_fallthru
        _
    $region6: #{tpu_custom_call.1} parent=1 // loop_footer
      %s31 = sadd.s32 1, %s27
    $region7: #{tpu_custom_call.1} parent=1 // loop_footer_branch
      %26 = sbr.rel target = $region3
    $region8: #{tpu_custom_call.1} parent=1 // loop_exit
      _
    %1067 = vsyncpa [#allocation3], 1
    %s1068 = scalar_lea.sflag [#allocation3], 1
    %1069 = vsyncpa %s1068, 1
    %1070 = vsyncpa [#allocation6], 1
    %s1071 = scalar_lea.sflag [#allocation6], 1
    %1072 = vsyncpa %s1071, 1
    %1073 = vsyncpa [#allocation9], 1
    %1074 = vsyncpa [#allocation4], 1
    %s1075 = scalar_lea.sflag [#allocation4], 1
    %1076 = vsyncpa %s1075, 1
    %1077 = vsyncpa [#allocation12], 1
    %s1078 = scalar_lea.sflag [#allocation12], 1
    %1079 = vsyncpa %s1078, 1

</llo_original>
